<compile_context>
chip_gen: v5e
topology: v5e:2x2
jax: 0.10.0
libtpu: 0.0.40
codegen_flags: <defaults>
</compile_context>

<pallas_src>
import numpy as np
import jax
import jax.numpy as jnp
from jax.experimental import pallas as pl
from jax.experimental.pallas import tpu as pltpu


_MIB = 1024 * 1024
_KRON_BUDGET = 4 * _MIB     # block-diagonal MLP weights (x2 for double-buffer)
_HEADROOM = 2 * _MIB


# ---------------------------------------------------------------------------
# Generation-aware sizing helpers
# ---------------------------------------------------------------------------
def _vmem_limit_bytes():
    """Scoped-VMEM limit derived from the local TPU's physical VMEM.

    v7x (64 MiB physical) -> ~44 MiB scoped; v5e/v6e (128 MiB) -> ~89 MiB.
    Falls back to the conservative v7x-sized number if the query fails.
    """
    phys = 64 * _MIB
    try:
        cap = getattr(pltpu.get_tpu_info(), "vmem_capacity_bytes", 0) or 0
        if cap > 0:
            phys = int(cap)
    except Exception:
        pass
    return int(max(24 * _MIB, min(int(phys * 0.7), 96 * _MIB)))


def _sublane_pack(dtype):
    # Rows per packed sublane group: f32 -> 8, bf16 -> 16, int8/fp8 -> 32.
    return max(8, 32 // np.dtype(dtype).itemsize)


def _pick_nb(N, C, hidden, hw_pad, itemsize, block_cap, pack):
    """Largest legal batch block nb for the fused path, or None (-> Path B)."""
    total_rows = N * C

    def legal(nb):
        rows = nb * C
        if rows % pack != 0 and rows != total_rows:
            return False                                  # sublane-illegal block
        if rows * hw_pad * itemsize > block_cap:
            return False                                  # x block too big
        if 16 * nb * nb * hidden * C > _KRON_BUDGET:
            return False                                  # kron weights too big
        return True

    divisors = [d for d in range(1, N + 1) if N % d == 0]
    # Prefer >= 2 grid steps so the 'parallel' axis can shard across v7x's two
    # TensorCores (one extra ~0.35us step is negligible on v5e/v6e).
    for nb in sorted((d for d in divisors if d <= N // 2), reverse=True):
        if legal(nb):
            return nb
    for nb in sorted(divisors, reverse=True):
        if legal(nb):
            return nb
    return None


# ---------------------------------------------------------------------------
# Kernels
# ---------------------------------------------------------------------------
def _make_fused_kernel(hw_true, hw_pad):
    inv_hw = 1.0 / float(hw_true)

    def kernel(x_ref, w1bd_ref, w2bd_ref, o_ref):
        x = x_ref[...].astype(jnp.float32)                    # (rows, hw_pad)
        if hw_pad != hw_true:                                 # static branch
            lane = jax.lax.broadcasted_iota(jnp.int32, x.shape, 1)
            valid = lane < hw_true
            xs = jnp.where(valid, x, 0.0)
            xm = jnp.where(valid, x, -jnp.inf)
        else:
            xs = x
            xm = x

        avg = jnp.sum(xs, axis=-1, keepdims=True) * inv_hw    # (rows, 1)
        mx = jnp.max(xm, axis=-1, keepdims=True)              # (rows, 1)
        pooled = jnp.concatenate([avg, mx], axis=-1)          # (rows, 2)

        # Shared MLP applied once to both pooled columns via block-diagonal
        # weights (kron(I_nb, w*)): stays in the sublane layout, no relayouts.
        h = jnp.dot(w1bd_ref[...], pooled, preferred_element_type=jnp.float32)
        h = jnp.maximum(h, 0.2 * h)                            # LeakyReLU(0.2)
        o = jnp.dot(w2bd_ref[...], h, preferred_element_type=jnp.float32)

        att = jax.nn.sigmoid(o[:, 0:1] + o[:, 1:2])            # (rows, 1)
        o_ref[...] = (x * att).astype(o_ref.dtype)             # broadcast over HW

    return kernel


def _make_pool_kernel(hw_true, hw_tile, needs_mask):
    inv_hw = 1.0 / float(hw_true)

    def kernel(x_ref, pooled_ref, sum_acc, max_acc):
        j = pl.program_id(1)

        @pl.when(j == 0)
        def _():
            sum_acc[...] = jnp.zeros_like(sum_acc)
            max_acc[...] = jnp.full_like(max_acc, -jnp.inf)

        x = x_ref[...].astype(jnp.float32)                     # (rb, hw_tile)
        if needs_mask:
            lane = jax.lax.broadcasted_iota(jnp.int32, x.shape, 1) + j * hw_tile
            valid = lane < hw_true
            xs = jnp.where(valid, x, 0.0)
            xm = jnp.where(valid, x, -jnp.inf)
        else:
            xs = x
            xm = x

        sum_acc[...] = sum_acc[...] + jnp.sum(xs, axis=-1, keepdims=True)
        max_acc[...] = jnp.maximum(max_acc[...],
                                   jnp.max(xm, axis=-1, keepdims=True))

        @pl.when(j == pl.num_programs(1) - 1)
        def _():
            pooled_ref[...] = jnp.concatenate(
                [sum_acc[...] * inv_hw, max_acc[...]], axis=-1)

    return kernel


def _rescale_kernel(x_ref, att_ref, o_ref):
    x = x_ref[...].astype(jnp.float32)
    o_ref[...] = (x * att_ref[...]).astype(o_ref.dtype)


# ---------------------------------------------------------------------------
# Paths
# ---------------------------------------------------------------------------
def _fused_path(x_flat, w1, w2, N, C, nb, hw_true, hw_pad, vmem_limit):
    rows = nb * C
    grid_n = N // nb
    eye = jnp.eye(nb, dtype=jnp.float32)
    w1_bd = jnp.kron(eye, w1.astype(jnp.float32))      # (nb*hidden, nb*C)
    w2_bd = jnp.kron(eye, w2.astype(jnp.float32))      # (nb*C, nb*hidden)

    return pl.pallas_call(
        _make_fused_kernel(hw_true, hw_pad),
        out_shape=jax.ShapeDtypeStruct(x_flat.shape, x_flat.dtype),
        grid_spec=pltpu.PrefetchScalarGridSpec(
            num_scalar_prefetch=0,
            grid=(grid_n,),
            in_specs=[
                pl.BlockSpec((rows, hw_pad), lambda i: (i, 0)),
                pl.BlockSpec(w1_bd.shape, lambda i: (0, 0)),
                pl.BlockSpec(w2_bd.shape, lambda i: (0, 0)),
            ],
            out_specs=pl.BlockSpec((rows, hw_pad), lambda i: (i, 0)),
        ),
        input_output_aliases={0: 0},
        compiler_params=pltpu.CompilerParams(
            dimension_semantics=("parallel",),
            vmem_limit_bytes=vmem_limit,
        ),
    )(x_flat, w1_bd, w2_bd)


def _two_pass_path(x_flat, w1, w2, N, C, hw_true, hw_pad, block_cap,
                   vmem_limit, pack):
    total_rows, _ = x_flat.shape
    itemsize = np.dtype(x_flat.dtype).itemsize

    row_candidates = [d for d in range(total_rows, 0, -1)
                      if total_rows % d == 0 and (d % pack == 0 or d == total_rows)]
    preferred_rows = [d for d in row_candidates if d <= 1024] or row_candidates
    m = hw_pad // 128
    hw_candidates = [128 * d for d in range(m, 0, -1) if m % d == 0]

    best = None
    for rb in preferred_rows:
        for ht in hw_candidates:
            if rb * ht * itemsize <= block_cap:
                if best is None or rb * ht > best[0] * best[1]:
                    best = (rb, ht)
                break
    if best is None:
        best = (min(row_candidates), 128)       # smallest legal block
    rb, ht = best
    grid = (total_rows // rb, hw_pad // ht)
    needs_mask = hw_pad != hw_true

    # Pass 1: tiled avg/max pooling over HW (running accumulators in VMEM).
    pooled = pl.pallas_call(
        _make_pool_kernel(hw_true, ht, needs_mask),
        out_shape=jax.ShapeDtypeStruct((total_rows, 2), jnp.float32),
        grid_spec=pltpu.PrefetchScalarGridSpec(
            num_scalar_prefetch=0,
            grid=grid,
            in_specs=[pl.BlockSpec((rb, ht), lambda i, j: (i, j))],
            out_specs=pl.BlockSpec((rb, 2), lambda i, j: (i, 0)),
            scratch_shapes=[pltpu.VMEM((rb, 1), jnp.float32),
                            pltpu.VMEM((rb, 1), jnp.float32)],
        ),
        compiler_params=pltpu.CompilerParams(
            dimension_semantics=("parallel", "arbitrary"),
            vmem_limit_bytes=vmem_limit,
        ),
    )(x_flat)

    # Shared MLP + sigmoid on the tiny (N, C) pooled tensor: O(N*C*hidden)
    # flops, negligible next to the two passes over x, so plain JAX is fine.
    w1f = w1.astype(jnp.float32)
    w2f = w2.astype(jnp.float32)
    avg = pooled[:, 0].reshape(N, C)
    mx = pooled[:, 1].reshape(N, C)

    def mlp(p):
        h = p @ w1f.T
        h = jnp.where(h >= 0, h, 0.2 * h)
        return h @ w2f.T

    att = jax.nn.sigmoid(mlp(avg) + mlp(mx)).reshape(total_rows, 1)
    att = att.astype(jnp.float32)

    # Pass 2: tiled rescale x * att (in place on x_flat's HBM buffer).
    return pl.pallas_call(
        _rescale_kernel,
        out_shape=jax.ShapeDtypeStruct(x_flat.shape, x_flat.dtype),
        grid_spec=pltpu.PrefetchScalarGridSpec(
            num_scalar_prefetch=0,
            grid=grid,
            in_specs=[pl.BlockSpec((rb, ht), lambda i, j: (i, j)),
                      pl.BlockSpec((rb, 1), lambda i, j: (i, 0))],
            out_specs=pl.BlockSpec((rb, ht), lambda i, j: (i, j)),
        ),
        input_output_aliases={0: 0},
        compiler_params=pltpu.CompilerParams(
            dimension_semantics=("parallel", "parallel"),
            vmem_limit_bytes=vmem_limit,
        ),
    )(x_flat, att)


# ---------------------------------------------------------------------------
# Public wrapper
# ---------------------------------------------------------------------------
def channel_attention(x_nchw, w1, w2, *, max_block_bytes=None):
    """ChannelAttention forward.  x: (N, C, H, W); w1: (hidden, C); w2: (C, hidden)."""
    N, C, H, W = x_nchw.shape
    hidden = w1.shape[0]
    hw_true = H * W
    hw_pad = ((hw_true + 127) // 128) * 128          # keep lanes dense
    itemsize = np.dtype(x_nchw.dtype).itemsize
    pack = _sublane_pack(x_nchw.dtype)

    vmem_limit = _vmem_limit_bytes()
    # x input + output blocks are each double-buffered -> 4x block size in VMEM.
    block_cap = max((vmem_limit - _KRON_BUDGET - _HEADROOM) // 4, 512 * 1024)
    if max_block_bytes is not None:
        block_cap = min(block_cap, max_block_bytes)

    x_flat = x_nchw.reshape(N * C, hw_true)
    if hw_pad != hw_true:
        x_flat = jnp.pad(x_flat, ((0, 0), (0, hw_pad - hw_true)))

    nb = _pick_nb(N, C, hidden, hw_pad, itemsize, block_cap, pack)
    if nb is not None:
        out_flat = _fused_path(x_flat, w1, w2, N, C, nb, hw_true, hw_pad,
                               vmem_limit)
    else:
        out_flat = _two_pass_path(x_flat, w1, w2, N, C, hw_true, hw_pad,
                                  block_cap, vmem_limit, pack)

    if hw_pad != hw_true:
        out_flat = out_flat[:, :hw_true]
    return out_flat.reshape(N, C, H, W)


def channel_attention_ref(x, w1, w2):
    """Pure-JAX reference (mirrors the PyTorch forward)."""
    avg = jnp.mean(x, axis=(2, 3), keepdims=True)      # (N, C, 1, 1)
    mx = jnp.max(x, axis=(2, 3), keepdims=True)        # (N, C, 1, 1)

    def mlp(p):
        p2 = p[..., 0, 0]                              # (N, C)
        h = p2 @ w1.T                                  # (N, hidden)
        h = jnp.where(h >= 0, h, 0.2 * h)
        o = h @ w2.T                                   # (N, C)
        return o[..., None, None]

    att = jax.nn.sigmoid(mlp(avg) + mlp(mx))
    return x * att


if __name__ == "__main__":
    # ChannelAttention(in_channels=4, reduction_ratio=16)
    N, C, H, W = 2, 4, 16, 16
    reduction_ratio = 16
    hidden = max(1, C // reduction_ratio)

    key = jax.random.PRNGKey(0)
    kx, k1, k2 = jax.random.split(key, 3)
    x = jax.random.normal(kx, (N, C, H, W), dtype=jnp.float32)
    w1 = jax.random.normal(k1, (hidden, C), dtype=jnp.float32) * (1.0 / np.sqrt(C))
    w2 = jax.random.normal(k2, (C, hidden), dtype=jnp.float32) * (1.0 / np.sqrt(hidden))

    # Compute references first (the Pallas calls alias their flat input buffer).
    ref = jax.block_until_ready(channel_attention_ref(x, w1, w2))

    # 1) Fused single-pass path (one read + one write of x).
    out = jax.block_until_ready(channel_attention(x, w1, w2))
    np.testing.assert_allclose(np.asarray(out), np.asarray(ref), rtol=1e-5, atol=1e-5)

    # 2) HW-tiled two-pass path (forced by a tiny block cap).
    out_b = jax.block_until_ready(channel_attention(x, w1, w2, max_block_bytes=4096))
    np.testing.assert_allclose(np.asarray(out_b), np.asarray(ref), rtol=1e-4, atol=1e-4)

    # 3) Non-128-multiple spatial size (lane padding + masked pooling), fused path.
    x9 = jax.random.normal(kx, (N, C, 9, 9), dtype=jnp.float32)
    ref9 = jax.block_until_ready(channel_attention_ref(x9, w1, w2))
    out9 = jax.block_until_ready(channel_attention(x9, w1, w2))
    np.testing.assert_allclose(np.asarray(out9), np.asarray(ref9), rtol=1e-4, atol=1e-4)

    # 4) Non-128-multiple spatial size on the two-pass path.
    x20 = jax.random.normal(k1, (N, C, 20, 20), dtype=jnp.float32)
    ref20 = jax.block_until_ready(channel_attention_ref(x20, w1, w2))
    out20 = jax.block_until_ready(channel_attention(x20, w1, w2, max_block_bytes=4096))
    np.testing.assert_allclose(np.asarray(out20), np.asarray(ref20), rtol=1e-4, atol=1e-4)

    # 5) bf16 I/O (pooling / MLP accumulate in f32 inside the kernel).
    xb = x.astype(jnp.bfloat16)
    refb = jax.block_until_ready(channel_attention_ref(xb.astype(jnp.float32), w1, w2))
    outb = jax.block_until_ready(channel_attention(xb, w1, w2))
    np.testing.assert_allclose(np.asarray(outb.astype(jnp.float32)), np.asarray(refb),
                               rtol=5e-2, atol=5e-2)

    print("KERNEL_OK")
</pallas_src>

<mosaic_0001>
module attributes {stable_mosaic.version = 11 : i64} {
  func.func @kernel(%arg0: i32, %arg1: memref<8x256xf32, #tpu.memory_space<vmem>>, %arg2: memref<2x8xf32, #tpu.memory_space<vmem>>, %arg3: memref<8x2xf32, #tpu.memory_space<vmem>>, %arg4: memref<8x256xf32, #tpu.memory_space<vmem>>) attributes {dimension_semantics = [#tpu.dimension_semantics<parallel>], iteration_bounds = array<i64: 1>, scalar_prefetch = 0 : i64, scratch_operands = 0 : i64, tpu.core_type = #tpu.core_type<tc>, window_params = [{transform_indices = @transform_0, window_bounds = array<i64: 8, 256>}, {pipeline_mode = #tpu.pipeline_mode<synchronous>, transform_indices = @transform_1, window_bounds = array<i64: 2, 8>}, {pipeline_mode = #tpu.pipeline_mode<synchronous>, transform_indices = @transform_2, window_bounds = array<i64: 8, 2>}, {transform_indices = @transform_3, window_bounds = array<i64: 8, 256>}]} {
    %c0 = arith.constant 0 : index
    %c0_0 = arith.constant 0 : index
    %0 = vector.load %arg1[%c0, %c0_0] : memref<8x256xf32, #tpu.memory_space<vmem>>, vector<8x256xf32>
    %cst = arith.constant dense<0.000000e+00> : vector<8xf32>
    %1 = vector.multi_reduction <add>, %0, %cst [1] : vector<8x256xf32> to vector<8xf32>
    %2 = vector.shape_cast %1 : vector<8xf32> to vector<8x1xf32>
    %cst_1 = arith.constant 3.906250e-03 : f32
    %3 = vector.broadcast %cst_1 : f32 to vector<8x1xf32>
    %4 = arith.mulf %2, %3 : vector<8x1xf32>
    %cst_2 = arith.constant dense<0xFF800000> : vector<8xf32>
    %5 = vector.multi_reduction <maximumf>, %0, %cst_2 [1] : vector<8x256xf32> to vector<8xf32>
    %6 = vector.shape_cast %5 : vector<8xf32> to vector<8x1xf32>
    %7 = tpu.concatenate %4, %6 in 1 : vector<8x1xf32>, vector<8x1xf32> -> vector<8x2xf32>
    %c0_3 = arith.constant 0 : index
    %c0_4 = arith.constant 0 : index
    %8 = vector.load %arg2[%c0_3, %c0_4] : memref<2x8xf32, #tpu.memory_space<vmem>>, vector<2x8xf32>
    %cst_5 = arith.constant dense<0.000000e+00> : vector<2x2xf32>
    %9 = tpu.matmul %8, %7, %cst_5 {dimension_numbers = #tpu.dot_dimension_numbers<[1], [0], [0], [1], [0, 0, 1, 1], [], []>} : vector<2x8xf32>, vector<8x2xf32>, vector<2x2xf32> -> vector<2x2xf32>
    %cst_6 = arith.constant 2.000000e-01 : f32
    %10 = vector.broadcast %cst_6 : f32 to vector<2x2xf32>
    %11 = arith.mulf %10, %9 : vector<2x2xf32>
    %12 = arith.maximumf %9, %11 : vector<2x2xf32>
    %c0_7 = arith.constant 0 : index
    %c0_8 = arith.constant 0 : index
    %13 = vector.load %arg3[%c0_7, %c0_8] : memref<8x2xf32, #tpu.memory_space<vmem>>, vector<8x2xf32>
    %cst_9 = arith.constant dense<0.000000e+00> : vector<8x2xf32>
    %14 = tpu.matmul %13, %12, %cst_9 {dimension_numbers = #tpu.dot_dimension_numbers<[1], [0], [0], [1], [0, 0, 1, 1], [], []>} : vector<8x2xf32>, vector<2x2xf32>, vector<8x2xf32> -> vector<8x2xf32>
    %15 = vector.extract_strided_slice %14 {offsets = [0, 0], sizes = [8, 1], strides = [1, 1]} : vector<8x2xf32> to vector<8x1xf32>
    %16 = vector.extract_strided_slice %14 {offsets = [0, 1], sizes = [8, 1], strides = [1, 1]} : vector<8x2xf32> to vector<8x1xf32>
    %17 = arith.addf %15, %16 : vector<8x1xf32>
    %18 = arith.negf %17 : vector<8x1xf32>
    %19 = math.exp %18 : vector<8x1xf32>
    %cst_10 = arith.constant 1.000000e+00 : f32
    %20 = vector.broadcast %cst_10 : f32 to vector<8x1xf32>
    %21 = arith.addf %20, %19 : vector<8x1xf32>
    %22 = arith.divf %20, %21 : vector<8x1xf32>
    %23 = vector.broadcast %22 : vector<8x1xf32> to vector<8x256xf32>
    %24 = arith.mulf %0, %23 : vector<8x256xf32>
    %c0_11 = arith.constant 0 : index
    %c0_12 = arith.constant 0 : index
    %25 = vector.load %arg4[%c0_11, %c0_12] : memref<8x256xf32, #tpu.memory_space<vmem>>, vector<8x256xf32>
    tpu.vector_store %arg4[%c0_11, %c0_12], %24 {strides = array<i32>} : memref<8x256xf32, #tpu.memory_space<vmem>>, vector<8x256xf32>,
    return
  }
  func.func @transform_0(%arg0: i32) -> (i32, i32) {
    %c0_i32 = arith.constant 0 : i32
    %c0_i32_0 = arith.constant 0 : i32
    return %arg0, %c0_i32 : i32, i32
  }
  func.func @transform_1(%arg0: i32) -> (i32, i32) {
    %c0_i32 = arith.constant 0 : i32
    %c0_i32_0 = arith.constant 0 : i32
    %c0_i32_1 = arith.constant 0 : i32
    return %c0_i32, %c0_i32_0 : i32, i32
  }
  func.func @transform_2(%arg0: i32) -> (i32, i32) {
    %c0_i32 = arith.constant 0 : i32
    %c0_i32_0 = arith.constant 0 : i32
    %c0_i32_1 = arith.constant 0 : i32
    return %c0_i32, %c0_i32_0 : i32, i32
  }
  func.func @transform_3(%arg0: i32) -> (i32, i32) {
    %c0_i32 = arith.constant 0 : i32
    %c0_i32_0 = arith.constant 0 : i32
    return %arg0, %c0_i32 : i32, i32
  }
}

</mosaic_0001>

<llo_original>
// kernel: tpu_custom_call.1
$region0: #{tpu_custom_call.1}
  #allocation0 [shape = 'u32[]', space=smem, size = 0x4, offset = 0x4, fixed_abs, tag = 'smem constant byte address 0x4 - core index']
  #allocation1 [shape = 'u32[72,128]{1,0:T(1,128)}', space=vmem, size = 0x9000, scoped, tag = 'internal scratch']
  %s0 = inlined_call_operand.hbm [shape: f32[8,256], index: 0, kind: input, shape index: {}, may-alias: {0,3}]
  %s1 = inlined_call_operand.vmem [shape: f32[2,8], index: 1, kind: input, shape index: {}]
  %s2 = inlined_call_operand.vmem [shape: f32[8,2], index: 2, kind: input, shape index: {}]
  %s3 = inlined_call_operand.hbm [shape: f32[8,256], index: 3, kind: output, shape index: {}, may-alias: {0,3}]
  %s4 = sld [smem:[#allocation0]]
  $region26: #{tpu_custom_call.1} parent=0
    _
  %s6 = ssub.s32 1, %s4
  %s7 = scalar_select 0, %s6, %s4
  $region1: #{tpu_custom_call.1} parent=0
    #allocation2 [shape = 'u8[8192]{0}', space=vmem, size = 0x2000, scoped, tag = 'input window, operand 0, single buffered']
    #allocation3 [shape = 's32[1]{0}', space=sflag, size = 0x4, scoped, tag = 'scoped memory for tpu_custom_call.1']
    #allocation4 [shape = 's32[1]{0}', space=sflag, size = 0x4, scoped, tag = 'scoped memory for tpu_custom_call.1']
    #allocation5 [shape = 'u8[8192]{0}', space=vmem, size = 0x2000, scoped, tag = 'output window, operand 0, single buffered']
    %8 = vsyncpa [#allocation3], 0
    %9 = vsyncpa [#allocation4], 0
    // Predicated region
    $region2: #{tpu_custom_call.1} parent=1 // pred_check
      _
    $region3: #{tpu_custom_call.1} parent=1 // pred_check_branch
      %11 = sbr.rel (0) target = $region5
    $region4: #{tpu_custom_call.1} parent=1 // pred_region
      %13 = vsyncadd [#allocation3], 0
      %s15 = sshll.u32 %s0, 4
      %s16 = int_to_ptr.hbm [resolvable:$true] %s15
      %s17 = sshll.u32 [#allocation2], 4
      %s18 = int_to_ptr.vmem [resolvable:$true] %s17
      %20 = dma.hbm_to_vmem [thread:$0]  %s16, 256, %s18, [#allocation3]
    $region5: #{tpu_custom_call.1} parent=1 // pred_fallthru
      _
    // Predicated region
    $region6: #{tpu_custom_call.1} parent=1 // pred_check
      _
    $region7: #{tpu_custom_call.1} parent=1 // pred_check_branch
      %22 = sbr.rel (0) target = $region9
    $region8: #{tpu_custom_call.1} parent=1 // pred_region
      _
    $region9: #{tpu_custom_call.1} parent=1 // pred_fallthru
      _
    // Predicated region
    $region10: #{tpu_custom_call.1} parent=1 // pred_check
      _
    $region11: #{tpu_custom_call.1} parent=1 // pred_check_branch
      %24 = sbr.rel (0) target = $region13
    $region12: #{tpu_custom_call.1} parent=1 // pred_region
      _
    $region13: #{tpu_custom_call.1} parent=1 // pred_fallthru
      _
    // Predicated region
    $region14: #{tpu_custom_call.1} parent=1 // pred_check
      _
    $region15: #{tpu_custom_call.1} parent=1 // pred_check_branch
      %26 = sbr.rel (0) target = $region17
    $region16: #{tpu_custom_call.1} parent=1 // pred_region
      %28 = dma.done [#allocation3], 256
    $region17: #{tpu_custom_call.1} parent=1 // pred_fallthru
      _
    %v29 = vld [vmem:[#allocation2] sm:$0xff]
    %v30 = vld [vmem:[#allocation2 + $0x8] sm:$0xff]
    %v31 = vadd.f32 %v29, %v30
    %32 = vadd.xlane.f32.xlu0 %v31
    %v33 = vpop.xlane.xlu0 %32
    %v34 = vmul.f32 %v33, 0.00390625
    %v35 = vmax.f32 %v29, %v30
    %36 = vmax.xlane.f32.xlu0 %v35
    %v37 = vpop.xlane.xlu0 %36
    %vm38 = vcmask 7168
    %v39 = vsel %vm38, %v34, %v37
    %v40 = vld [vmem:[%s1] sm:$0x3]
    %vm41 = vcmask 64512
    %v43 = vsel %vm41, %v40, 0
    %45 = vmatpush.msra.mxu0 0.0
    %46 = vmatpush.msra.mxu0 0.0
    %47 = vmatpush.msra.mxu0 0.0
    %48 = vmatpush.msra.mxu0 0.0
    %49 = vmatpush.msra.mxu0 0.0
    %50 = vmatpush.msra.mxu0 0.0
    %51 = vmatpush.msra.mxu0 0.0
    %52 = vmatpush.msra.mxu0 0.0
    %53 = vmatpush.msra.mxu0 0.0
    %54 = vmatpush.msra.mxu0 0.0
    %55 = vmatpush.msra.mxu0 0.0
    %56 = vmatpush.msra.mxu0 0.0
    %57 = vmatpush.msra.mxu0 0.0
    %58 = vmatpush.msra.mxu0 0.0
    %59 = vmatpush.msra.mxu0 0.0
    %60 = vmatpush.msra.mxu0 %v39
    %61 = vmatmul.f32.gmra.mxu0 %v43
    %v62 = vpop.f32.mrf.mxu0
    %v63 = vadd.f32 0.0, %v62
    %64 = vdwg.mxu0
    %v65 = vmul.f32 %v63, 0.2
    %v66 = vmax.f32 %v63, %v65
    %v67 = vld [vmem:[%s2] sm:$0xff]
    %vm68 = vcmask 15360
    %v70 = vsel %vm68, %v67, 0
    %vm72 = vcmask 1041408
    %v74 = vsel %vm72, %v66, 0
    %76 = vmatpush.msra.mxu0 0.0
    %77 = vmatpush.msra.mxu0 0.0
    %78 = vmatpush.msra.mxu0 0.0
    %79 = vmatpush.msra.mxu0 0.0
    %80 = vmatpush.msra.mxu0 0.0
    %81 = vmatpush.msra.mxu0 0.0
    %82 = vmatpush.msra.mxu0 0.0
    %83 = vmatpush.msra.mxu0 0.0
    %84 = vmatpush.msra.mxu0 0.0
    %85 = vmatpush.msra.mxu0 0.0
    %86 = vmatpush.msra.mxu0 0.0
    %87 = vmatpush.msra.mxu0 0.0
    %88 = vmatpush.msra.mxu0 0.0
    %89 = vmatpush.msra.mxu0 0.0
    %90 = vmatpush.msra.mxu0 0.0
    %91 = vmatpush.msra.mxu0 %v74
    %92 = vmatmul.f32.gmra.mxu0 %v70
    %v93 = vpop.f32.mrf.mxu0
    %v94 = vadd.f32 0.0, %v93
    %95 = vdwg.mxu0
    %97 = vrot.lane.b32.xlu0 %v94, 127
    %v98 = vpop.permute.xlu0 %97
    %v100 = vadd.f32 %v94, %v98
    %v101 = vxor.u32 %v100, 2147483648
    %v102 = vmul.f32 %v101, 1.442695
    %v103 = vpow.pop %v102
    %v104 = vadd.f32 %v103, 1.0
    %v105 = vrcp.pop %v104
    %v106 = vmul.f32 %v104, %v105
    %v107 = vsub.f32 1.0, %v106
    %v108 = vmul.f32 %v105, %v107
    %v109 = vadd.f32 %v105, %v108
    %vm110 = vweird.f32 %v104
    %vm111 = vweird.f32 %v105
    %vm112 = vmor %vm110, %vm111
    %v113 = vsel %vm112, %v105, %v109
    %v114 = vand.u32 2147483647, %v104
    %vm115 = vcmp.eq.f32.partialorder %v114, 8.507059e+37
    %v116 = vand.u32 %v104, 2147483648
    %v117 = vor.u32 1.1754944e-38, %v116
    %v118 = vsel %vm115, %v117, %v113
    %v119 = vmul.f32 1.0, %v118
    %121 = vset.pattern.permute.xlu0 0
    %122 = vperm.xlu0 %121, %v119
    %v123 = vpop.permute.xlu0 %122
    %v125 = vmul.f32 %v29, %v123
    %v126 = vmul.f32 %v30, %v123
    %127 = vst [vmem:[#allocation5] sm:$0xff] %v125
    %128 = vst [vmem:[#allocation5 + $0x8] sm:$0xff] %v126
    // Predicated region
    $region18: #{tpu_custom_call.1} parent=1 // pred_check
      _
    $region19: #{tpu_custom_call.1} parent=1 // pred_check_branch
      %130 = sbr.rel (0) target = $region21
    $region20: #{tpu_custom_call.1} parent=1 // pred_region
      %132 = vsyncadd [#allocation4], 0
      %s134 = sshll.u32 [#allocation5], 4
      %s135 = int_to_ptr.vmem [resolvable:$true] %s134
      %s136 = sshll.u32 %s3, 4
      %s137 = int_to_ptr.hbm [resolvable:$true] %s136
      %139 = dma.vmem_to_hbm [thread:$0]  %s135, 256, %s137, [#allocation4]
    $region21: #{tpu_custom_call.1} parent=1 // pred_fallthru
      _
    // Predicated region
    $region22: #{tpu_custom_call.1} parent=1 // pred_check
      _
    $region23: #{tpu_custom_call.1} parent=1 // pred_check_branch
      %141 = sbr.rel (0) target = $region25
    $region24: #{tpu_custom_call.1} parent=1 // pred_region
      %143 = dma.done [#allocation4], 256
    $region25: #{tpu_custom_call.1} parent=1 // pred_fallthru
      _
    %144 = vsyncpa [#allocation3], 1
    %145 = vsyncpa [#allocation4], 1

</llo_original>
